<compile_context>
chip_gen: v6e
topology: v6e:2x2x1
jax: 0.10.0
libtpu: 0.0.40
codegen_flags: <defaults>
</compile_context>

<pallas_src>
import jax
import jax.numpy as jnp
import numpy as np
from jax.experimental import pallas as pl
from jax.experimental.pallas import tpu as pltpu

LN_EPS = 1e-5  # PyTorch nn.LayerNorm default


def _layer_norm(x, gamma, beta):
    mu = jnp.mean(x, axis=-1, keepdims=True)
    var = jnp.mean((x - mu) ** 2, axis=-1, keepdims=True)
    return (x - mu) * jax.lax.rsqrt(var + LN_EPS) * gamma + beta


def traj_score_kernel(feat_ref, traj_ref,
                      w1f_ref, w1t_ref, b1_ref, g1_ref, be1_ref,
                      w2_ref, b2_ref, g2_ref, be2_ref,
                      w3_ref, b3_ref,
                      out_ref):
    # One block of TB batch elements per grid step.
    TB = feat_ref.shape[0]
    hidden = w2_ref.shape[0]
    M = out_ref.shape[1]

    feat = feat_ref[...].astype(jnp.float32)      # (TB, C)
    traj = traj_ref[...].astype(jnp.float32)      # (TB*M, H2)

    # Linear1 over cat([feat, traj]) == traj @ W1t + broadcast_M(feat @ W1f + b1)
    hf = jnp.dot(feat, w1f_ref[...],
                 preferred_element_type=jnp.float32) + b1_ref[...]          # (TB, hidden)
    h = jnp.dot(traj, w1t_ref[...], preferred_element_type=jnp.float32)     # (TB*M, hidden)
    h = (h.reshape(TB, M, hidden) + hf[:, None, :]).reshape(TB * M, hidden)
    h = jnp.maximum(_layer_norm(h, g1_ref[...], be1_ref[...]), 0.0)

    # Linear2 + LayerNorm + ReLU
    h = jnp.dot(h, w2_ref[...], preferred_element_type=jnp.float32) + b2_ref[...]
    h = jnp.maximum(_layer_norm(h, g2_ref[...], be2_ref[...]), 0.0)

    # Final scoring Linear (hidden -> 1) as multiply + lane reduction.
    # w3_ref is the (1, hidden) weight row; b3_ref is (1, 1).
    s = jnp.sum(h.reshape(TB, M, hidden) * w3_ref[...], axis=-1) + b3_ref[...]   # (TB, M)

    # Softmax over the M candidates (exact reciprocal so rows sum to 1 tightly).
    s = s - jnp.max(s, axis=-1, keepdims=True)
    e = jnp.exp(s)
    out_ref[...] = (e * pl.reciprocal(jnp.sum(e, axis=-1, keepdims=True))).astype(out_ref.dtype)


def traj_score_selection(feat_in, traj_in, params, target_rows=512):
    """feat_in: [B, 1, C], traj_in: [B, M, 2*horizon] -> [B, M] softmax scores."""
    B, M, H2 = traj_in.shape
    C = feat_in.shape[-1]
    hidden = params["w2"].shape[0]

    # Fold the concat into Linear1 by splitting W1 into feat / traj halves.
    w1f = params["w1"][:C]                 # [C, hidden]
    w1t = params["w1"][C:]                 # [H2, hidden]
    w3_row = params["w3"].reshape(1, hidden)

    # Batch-block size: feed ~target_rows flattened rows (TB*M) per matmul.
    block_b = max(1, min(B, pl.cdiv(target_rows, M)))
    if block_b < B:
        block_b = pl.cdiv(block_b, 8) * 8  # sublane-aligned tiles when grid > 1
    n_blocks = pl.cdiv(B, block_b)
    Bp = n_blocks * block_b

    feat2 = feat_in.reshape(B, C)
    traj2 = traj_in.reshape(B * M, H2)
    if Bp != B:
        feat2 = jnp.pad(feat2, ((0, Bp - B), (0, 0)))
        traj2 = jnp.pad(traj2, ((0, (Bp - B) * M), (0, 0)))

    weights = (w1f, w1t, params["b1"], params["g1"], params["be1"],
               params["w2"], params["b2"], params["g2"], params["be2"],
               w3_row, params["b3"])

    def full_spec(shape):
        nd = len(shape)
        return pl.BlockSpec(shape, lambda b, _nd=nd: (0,) * _nd)

    out = pl.pallas_call(
        traj_score_kernel,
        out_shape=jax.ShapeDtypeStruct((Bp, M), jnp.float32),
        grid_spec=pltpu.PrefetchScalarGridSpec(
            num_scalar_prefetch=0,
            grid=(n_blocks,),
            in_specs=[
                pl.BlockSpec((block_b, C), lambda b: (b, 0)),
                pl.BlockSpec((block_b * M, H2), lambda b: (b, 0)),
            ] + [full_spec(w.shape) for w in weights],
            out_specs=pl.BlockSpec((block_b, M), lambda b: (b, 0)),
        ),
        compiler_params=pltpu.CompilerParams(
            dimension_semantics=("parallel",)),
    )(feat2, traj2, *weights)
    return out[:B]


def traj_score_reference(feat_in, traj_in, params):
    """Pure-JAX reference of the PyTorch forward (for verification)."""
    B, M, H2 = traj_in.shape
    x = jnp.concatenate([jnp.repeat(feat_in, M, axis=1), traj_in], axis=2)  # [B, M, C+H2]
    h = jnp.einsum("bmd,dh->bmh", x, params["w1"],
                   precision=jax.lax.Precision.HIGHEST) + params["b1"]
    h = jnp.maximum(_layer_norm(h, params["g1"], params["be1"]), 0.0)
    h = jnp.einsum("bmh,hk->bmk", h, params["w2"],
                   precision=jax.lax.Precision.HIGHEST) + params["b2"]
    h = jnp.maximum(_layer_norm(h, params["g2"], params["be2"]), 0.0)
    s = jnp.einsum("bmh,ho->bmo", h, params["w3"],
                   precision=jax.lax.Precision.HIGHEST) + params["b3"]
    s = s[..., 0]                                                           # [B, M]
    return jax.nn.softmax(s, axis=-1)


def init_params(key, feat_channels, horizon, hidden_dim):
    D = feat_channels + 2 * horizon
    ks = jax.random.split(key, 6)

    def lin(k, fan_in, shape):
        bound = 1.0 / np.sqrt(fan_in)
        return jax.random.uniform(k, shape, jnp.float32, -bound, bound)

    return {
        "w1": lin(ks[0], D, (D, hidden_dim)),
        "b1": lin(ks[1], D, (1, hidden_dim)),
        "g1": jnp.ones((1, hidden_dim), jnp.float32),
        "be1": jnp.zeros((1, hidden_dim), jnp.float32),
        "w2": lin(ks[2], hidden_dim, (hidden_dim, hidden_dim)),
        "b2": lin(ks[3], hidden_dim, (1, hidden_dim)),
        "g2": jnp.ones((1, hidden_dim), jnp.float32),
        "be2": jnp.zeros((1, hidden_dim), jnp.float32),
        "w3": lin(ks[4], hidden_dim, (hidden_dim, 1)),
        "b3": lin(ks[5], hidden_dim, (1, 1)),
    }


if __name__ == "__main__":
    # Small shapes consistent with the module: batch=2, feat_channels=32,
    # horizon=8 (so traj feature dim = 16), M=8 candidates, hidden_dim=32.
    B, C, horizon, M, hidden = 2, 32, 8, 8, 32

    key = jax.random.PRNGKey(0)
    k_feat, k_traj, k_param = jax.random.split(key, 3)

    feat_in = jax.random.normal(k_feat, (B, 1, C), jnp.float32)
    traj_in = jax.random.normal(k_traj, (B, M, 2 * horizon), jnp.float32)
    params = init_params(k_param, C, horizon, hidden)

    out = traj_score_selection(feat_in, traj_in, params)
    out = jax.block_until_ready(out)

    ref = traj_score_reference(feat_in, traj_in, params)
    np.testing.assert_allclose(np.asarray(out), np.asarray(ref), rtol=2e-2, atol=2e-3)
    assert out.shape == (B, M)
    np.testing.assert_allclose(np.asarray(out).sum(axis=-1), np.ones(B), atol=1e-4)

    print("KERNEL_OK")
</pallas_src>

<mosaic_0001>
module attributes {stable_mosaic.version = 11 : i64} {
  func.func @traj_score_kernel(%arg0: i32, %arg1: memref<2x32xf32, #tpu.memory_space<vmem>>, %arg2: memref<16x16xf32, #tpu.memory_space<vmem>>, %arg3: memref<32x32xf32, #tpu.memory_space<vmem>>, %arg4: memref<16x32xf32, #tpu.memory_space<vmem>>, %arg5: memref<1x32xf32, #tpu.memory_space<vmem>>, %arg6: memref<1x32xf32, #tpu.memory_space<vmem>>, %arg7: memref<1x32xf32, #tpu.memory_space<vmem>>, %arg8: memref<32x32xf32, #tpu.memory_space<vmem>>, %arg9: memref<1x32xf32, #tpu.memory_space<vmem>>, %arg10: memref<1x32xf32, #tpu.memory_space<vmem>>, %arg11: memref<1x32xf32, #tpu.memory_space<vmem>>, %arg12: memref<1x32xf32, #tpu.memory_space<vmem>>, %arg13: memref<1x1xf32, #tpu.memory_space<vmem>>, %arg14: memref<2x8xf32, #tpu.memory_space<vmem>>) attributes {dimension_semantics = [#tpu.dimension_semantics<parallel>], iteration_bounds = array<i64: 1>, scalar_prefetch = 0 : i64, scratch_operands = 0 : i64, tpu.core_type = #tpu.core_type<tc>, window_params = [{transform_indices = @transform_0, window_bounds = array<i64: 2, 32>}, {transform_indices = @transform_1, window_bounds = array<i64: 16, 16>}, {pipeline_mode = #tpu.pipeline_mode<synchronous>, transform_indices = @transform_2, window_bounds = array<i64: 32, 32>}, {pipeline_mode = #tpu.pipeline_mode<synchronous>, transform_indices = @transform_3, window_bounds = array<i64: 16, 32>}, {pipeline_mode = #tpu.pipeline_mode<synchronous>, transform_indices = @transform_4, window_bounds = array<i64: 1, 32>}, {pipeline_mode = #tpu.pipeline_mode<synchronous>, transform_indices = @transform_5, window_bounds = array<i64: 1, 32>}, {pipeline_mode = #tpu.pipeline_mode<synchronous>, transform_indices = @transform_6, window_bounds = array<i64: 1, 32>}, {pipeline_mode = #tpu.pipeline_mode<synchronous>, transform_indices = @transform_7, window_bounds = array<i64: 32, 32>}, {pipeline_mode = #tpu.pipeline_mode<synchronous>, transform_indices = @transform_8, window_bounds = array<i64: 1, 32>}, {pipeline_mode = #tpu.pipeline_mode<synchronous>, transform_indices = @transform_9, window_bounds = array<i64: 1, 32>}, {pipeline_mode = #tpu.pipeline_mode<synchronous>, transform_indices = @transform_10, window_bounds = array<i64: 1, 32>}, {pipeline_mode = #tpu.pipeline_mode<synchronous>, transform_indices = @transform_11, window_bounds = array<i64: 1, 32>}, {pipeline_mode = #tpu.pipeline_mode<synchronous>, transform_indices = @transform_12, window_bounds = array<i64: 1, 1>}, {transform_indices = @transform_13, window_bounds = array<i64: 2, 8>}]} {
    %c0 = arith.constant 0 : index
    %c0_0 = arith.constant 0 : index
    %0 = vector.load %arg1[%c0, %c0_0] : memref<2x32xf32, #tpu.memory_space<vmem>>, vector<2x32xf32>
    %c0_1 = arith.constant 0 : index
    %c0_2 = arith.constant 0 : index
    %1 = vector.load %arg2[%c0_1, %c0_2] : memref<16x16xf32, #tpu.memory_space<vmem>>, vector<16x16xf32>
    %c0_3 = arith.constant 0 : index
    %c0_4 = arith.constant 0 : index
    %2 = vector.load %arg3[%c0_3, %c0_4] : memref<32x32xf32, #tpu.memory_space<vmem>>, vector<32x32xf32>
    %cst = arith.constant dense<0.000000e+00> : vector<2x32xf32>
    %3 = tpu.matmul %0, %2, %cst {dimension_numbers = #tpu.dot_dimension_numbers<[1], [0], [0], [1], [0, 0, 1, 1], [], []>} : vector<2x32xf32>, vector<32x32xf32>, vector<2x32xf32> -> vector<2x32xf32>
    %c0_5 = arith.constant 0 : index
    %c0_6 = arith.constant 0 : index
    %4 = vector.load %arg5[%c0_5, %c0_6] : memref<1x32xf32, #tpu.memory_space<vmem>>, vector<1x32xf32>
    %5 = vector.broadcast %4 : vector<1x32xf32> to vector<2x32xf32>
    %6 = arith.addf %3, %5 : vector<2x32xf32>
    %c0_7 = arith.constant 0 : index
    %c0_8 = arith.constant 0 : index
    %7 = vector.load %arg4[%c0_7, %c0_8] : memref<16x32xf32, #tpu.memory_space<vmem>>, vector<16x32xf32>
    %cst_9 = arith.constant dense<0.000000e+00> : vector<16x32xf32>
    %8 = tpu.matmul %1, %7, %cst_9 {dimension_numbers = #tpu.dot_dimension_numbers<[1], [0], [0], [1], [0, 0, 1, 1], [], []>} : vector<16x16xf32>, vector<16x32xf32>, vector<16x32xf32> -> vector<16x32xf32>
    %9 = vector.shape_cast %8 : vector<16x32xf32> to vector<2x8x32xf32>
    %10 = vector.shape_cast %6 : vector<2x32xf32> to vector<2x1x32xf32>
    %11 = vector.broadcast %10 : vector<2x1x32xf32> to vector<2x8x32xf32>
    %12 = arith.addf %9, %11 : vector<2x8x32xf32>
    %13 = vector.shape_cast %12 : vector<2x8x32xf32> to vector<16x32xf32>
    %c0_10 = arith.constant 0 : index
    %c0_11 = arith.constant 0 : index
    %14 = vector.load %arg6[%c0_10, %c0_11] : memref<1x32xf32, #tpu.memory_space<vmem>>, vector<1x32xf32>
    %c0_12 = arith.constant 0 : index
    %c0_13 = arith.constant 0 : index
    %15 = vector.load %arg7[%c0_12, %c0_13] : memref<1x32xf32, #tpu.memory_space<vmem>>, vector<1x32xf32>
    %cst_14 = arith.constant dense<0.000000e+00> : vector<16xf32>
    %16 = vector.multi_reduction <add>, %13, %cst_14 [1] : vector<16x32xf32> to vector<16xf32>
    %17 = vector.shape_cast %16 : vector<16xf32> to vector<16x1xf32>
    %cst_15 = arith.constant 3.200000e+01 : f32
    %18 = vector.broadcast %cst_15 : f32 to vector<16x1xf32>
    %19 = arith.divf %17, %18 : vector<16x1xf32>
    %20 = vector.broadcast %19 : vector<16x1xf32> to vector<16x32xf32>
    %21 = arith.subf %13, %20 : vector<16x32xf32>
    %22 = arith.mulf %21, %21 : vector<16x32xf32>
    %cst_16 = arith.constant dense<0.000000e+00> : vector<16xf32>
    %23 = vector.multi_reduction <add>, %22, %cst_16 [1] : vector<16x32xf32> to vector<16xf32>
    %24 = vector.shape_cast %23 : vector<16xf32> to vector<16x1xf32>
    %cst_17 = arith.constant 3.200000e+01 : f32
    %25 = vector.broadcast %cst_17 : f32 to vector<16x1xf32>
    %26 = arith.divf %24, %25 : vector<16x1xf32>
    %27 = vector.broadcast %19 : vector<16x1xf32> to vector<16x32xf32>
    %28 = arith.subf %13, %27 : vector<16x32xf32>
    %cst_18 = arith.constant 9.99999974E-6 : f32
    %29 = vector.broadcast %cst_18 : f32 to vector<16x1xf32>
    %30 = arith.addf %26, %29 : vector<16x1xf32>
    %31 = math.rsqrt %30 : vector<16x1xf32>
    %32 = vector.broadcast %31 : vector<16x1xf32> to vector<16x32xf32>
    %33 = arith.mulf %28, %32 : vector<16x32xf32>
    %34 = vector.broadcast %14 : vector<1x32xf32> to vector<16x32xf32>
    %35 = arith.mulf %33, %34 : vector<16x32xf32>
    %36 = vector.broadcast %15 : vector<1x32xf32> to vector<16x32xf32>
    %37 = arith.addf %35, %36 : vector<16x32xf32>
    %cst_19 = arith.constant 0.000000e+00 : f32
    %38 = vector.broadcast %cst_19 : f32 to vector<16x32xf32>
    %39 = arith.maximumf %37, %38 : vector<16x32xf32>
    %c0_20 = arith.constant 0 : index
    %c0_21 = arith.constant 0 : index
    %40 = vector.load %arg8[%c0_20, %c0_21] : memref<32x32xf32, #tpu.memory_space<vmem>>, vector<32x32xf32>
    %cst_22 = arith.constant dense<0.000000e+00> : vector<16x32xf32>
    %41 = tpu.matmul %39, %40, %cst_22 {dimension_numbers = #tpu.dot_dimension_numbers<[1], [0], [0], [1], [0, 0, 1, 1], [], []>} : vector<16x32xf32>, vector<32x32xf32>, vector<16x32xf32> -> vector<16x32xf32>
    %c0_23 = arith.constant 0 : index
    %c0_24 = arith.constant 0 : index
    %42 = vector.load %arg9[%c0_23, %c0_24] : memref<1x32xf32, #tpu.memory_space<vmem>>, vector<1x32xf32>
    %43 = vector.broadcast %42 : vector<1x32xf32> to vector<16x32xf32>
    %44 = arith.addf %41, %43 : vector<16x32xf32>
    %c0_25 = arith.constant 0 : index
    %c0_26 = arith.constant 0 : index
    %45 = vector.load %arg10[%c0_25, %c0_26] : memref<1x32xf32, #tpu.memory_space<vmem>>, vector<1x32xf32>
    %c0_27 = arith.constant 0 : index
    %c0_28 = arith.constant 0 : index
    %46 = vector.load %arg11[%c0_27, %c0_28] : memref<1x32xf32, #tpu.memory_space<vmem>>, vector<1x32xf32>
    %cst_29 = arith.constant dense<0.000000e+00> : vector<16xf32>
    %47 = vector.multi_reduction <add>, %44, %cst_29 [1] : vector<16x32xf32> to vector<16xf32>
    %48 = vector.shape_cast %47 : vector<16xf32> to vector<16x1xf32>
    %cst_30 = arith.constant 3.200000e+01 : f32
    %49 = vector.broadcast %cst_30 : f32 to vector<16x1xf32>
    %50 = arith.divf %48, %49 : vector<16x1xf32>
    %51 = vector.broadcast %50 : vector<16x1xf32> to vector<16x32xf32>
    %52 = arith.subf %44, %51 : vector<16x32xf32>
    %53 = arith.mulf %52, %52 : vector<16x32xf32>
    %cst_31 = arith.constant dense<0.000000e+00> : vector<16xf32>
    %54 = vector.multi_reduction <add>, %53, %cst_31 [1] : vector<16x32xf32> to vector<16xf32>
    %55 = vector.shape_cast %54 : vector<16xf32> to vector<16x1xf32>
    %cst_32 = arith.constant 3.200000e+01 : f32
    %56 = vector.broadcast %cst_32 : f32 to vector<16x1xf32>
    %57 = arith.divf %55, %56 : vector<16x1xf32>
    %58 = vector.broadcast %50 : vector<16x1xf32> to vector<16x32xf32>
    %59 = arith.subf %44, %58 : vector<16x32xf32>
    %cst_33 = arith.constant 9.99999974E-6 : f32
    %60 = vector.broadcast %cst_33 : f32 to vector<16x1xf32>
    %61 = arith.addf %57, %60 : vector<16x1xf32>
    %62 = math.rsqrt %61 : vector<16x1xf32>
    %63 = vector.broadcast %62 : vector<16x1xf32> to vector<16x32xf32>
    %64 = arith.mulf %59, %63 : vector<16x32xf32>
    %65 = vector.broadcast %45 : vector<1x32xf32> to vector<16x32xf32>
    %66 = arith.mulf %64, %65 : vector<16x32xf32>
    %67 = vector.broadcast %46 : vector<1x32xf32> to vector<16x32xf32>
    %68 = arith.addf %66, %67 : vector<16x32xf32>
    %cst_34 = arith.constant 0.000000e+00 : f32
    %69 = vector.broadcast %cst_34 : f32 to vector<16x32xf32>
    %70 = arith.maximumf %68, %69 : vector<16x32xf32>
    %71 = vector.shape_cast %70 : vector<16x32xf32> to vector<2x8x32xf32>
    %c0_35 = arith.constant 0 : index
    %c0_36 = arith.constant 0 : index
    %72 = vector.load %arg12[%c0_35, %c0_36] : memref<1x32xf32, #tpu.memory_space<vmem>>, vector<1x32xf32>
    %73 = vector.shape_cast %72 : vector<1x32xf32> to vector<1x1x32xf32>
    %74 = vector.broadcast %73 : vector<1x1x32xf32> to vector<2x8x32xf32>
    %75 = arith.mulf %71, %74 : vector<2x8x32xf32>
    %cst_37 = arith.constant dense<0.000000e+00> : vector<2x8xf32>
    %76 = vector.multi_reduction <add>, %75, %cst_37 [2] : vector<2x8x32xf32> to vector<2x8xf32>
    %c0_38 = arith.constant 0 : index
    %c0_39 = arith.constant 0 : index
    %77 = vector.load %arg13[%c0_38, %c0_39] : memref<1x1xf32, #tpu.memory_space<vmem>>, vector<1x1xf32>
    %78 = vector.broadcast %77 : vector<1x1xf32> to vector<2x8xf32>
    %79 = arith.addf %76, %78 : vector<2x8xf32>
    %cst_40 = arith.constant dense<0xFF800000> : vector<2xf32>
    %80 = vector.multi_reduction <maximumf>, %79, %cst_40 [1] : vector<2x8xf32> to vector<2xf32>
    %81 = vector.shape_cast %80 : vector<2xf32> to vector<2x1xf32>
    %82 = vector.broadcast %81 : vector<2x1xf32> to vector<2x8xf32>
    %83 = arith.subf %79, %82 : vector<2x8xf32>
    %84 = math.exp %83 : vector<2x8xf32>
    %cst_41 = arith.constant dense<0.000000e+00> : vector<2xf32>
    %85 = vector.multi_reduction <add>, %84, %cst_41 [1] : vector<2x8xf32> to vector<2xf32>
    %86 = vector.shape_cast %85 : vector<2xf32> to vector<2x1xf32>
    %87 = tpu.reciprocal %86 : vector<2x1xf32> -> vector<2x1xf32>
    %88 = vector.broadcast %87 : vector<2x1xf32> to vector<2x8xf32>
    %89 = arith.mulf %84, %88 : vector<2x8xf32>
    %c0_42 = arith.constant 0 : index
    %c0_43 = arith.constant 0 : index
    %90 = vector.load %arg14[%c0_42, %c0_43] : memref<2x8xf32, #tpu.memory_space<vmem>>, vector<2x8xf32>
    tpu.vector_store %arg14[%c0_42, %c0_43], %89 {strides = array<i32>} : memref<2x8xf32, #tpu.memory_space<vmem>>, vector<2x8xf32>,
    return
  }
  func.func @transform_0(%arg0: i32) -> (i32, i32) {
    %c0_i32 = arith.constant 0 : i32
    %c0_i32_0 = arith.constant 0 : i32
    return %arg0, %c0_i32 : i32, i32
  }
  func.func @transform_1(%arg0: i32) -> (i32, i32) {
    %c0_i32 = arith.constant 0 : i32
    %c0_i32_0 = arith.constant 0 : i32
    return %arg0, %c0_i32 : i32, i32
  }
  func.func @transform_2(%arg0: i32) -> (i32, i32) {
    %c0_i32 = arith.constant 0 : i32
    %c0_i32_0 = arith.constant 0 : i32
    %c0_i32_1 = arith.constant 0 : i32
    return %c0_i32, %c0_i32_0 : i32, i32
  }
  func.func @transform_3(%arg0: i32) -> (i32, i32) {
    %c0_i32 = arith.constant 0 : i32
    %c0_i32_0 = arith.constant 0 : i32
    %c0_i32_1 = arith.constant 0 : i32
    return %c0_i32, %c0_i32_0 : i32, i32
  }
  func.func @transform_4(%arg0: i32) -> (i32, i32) {
    %c0_i32 = arith.constant 0 : i32
    %c0_i32_0 = arith.constant 0 : i32
    %c0_i32_1 = arith.constant 0 : i32
    return %c0_i32, %c0_i32_0 : i32, i32
  }
  func.func @transform_5(%arg0: i32) -> (i32, i32) {
    %c0_i32 = arith.constant 0 : i32
    %c0_i32_0 = arith.constant 0 : i32
    %c0_i32_1 = arith.constant 0 : i32
    return %c0_i32, %c0_i32_0 : i32, i32
  }
  func.func @transform_6(%arg0: i32) -> (i32, i32) {
    %c0_i32 = arith.constant 0 : i32
    %c0_i32_0 = arith.constant 0 : i32
    %c0_i32_1 = arith.constant 0 : i32
    return %c0_i32, %c0_i32_0 : i32, i32
  }
  func.func @transform_7(%arg0: i32) -> (i32, i32) {
    %c0_i32 = arith.constant 0 : i32
    %c0_i32_0 = arith.constant 0 : i32
    %c0_i32_1 = arith.constant 0 : i32
    return %c0_i32, %c0_i32_0 : i32, i32
  }
  func.func @transform_8(%arg0: i32) -> (i32, i32) {
    %c0_i32 = arith.constant 0 : i32
    %c0_i32_0 = arith.constant 0 : i32
    %c0_i32_1 = arith.constant 0 : i32
    return %c0_i32, %c0_i32_0 : i32, i32
  }
  func.func @transform_9(%arg0: i32) -> (i32, i32) {
    %c0_i32 = arith.constant 0 : i32
    %c0_i32_0 = arith.constant 0 : i32
    %c0_i32_1 = arith.constant 0 : i32
    return %c0_i32, %c0_i32_0 : i32, i32
  }
  func.func @transform_10(%arg0: i32) -> (i32, i32) {
    %c0_i32 = arith.constant 0 : i32
    %c0_i32_0 = arith.constant 0 : i32
    %c0_i32_1 = arith.constant 0 : i32
    return %c0_i32, %c0_i32_0 : i32, i32
  }
  func.func @transform_11(%arg0: i32) -> (i32, i32) {
    %c0_i32 = arith.constant 0 : i32
    %c0_i32_0 = arith.constant 0 : i32
    %c0_i32_1 = arith.constant 0 : i32
    return %c0_i32, %c0_i32_0 : i32, i32
  }
  func.func @transform_12(%arg0: i32) -> (i32, i32) {
    %c0_i32 = arith.constant 0 : i32
    %c0_i32_0 = arith.constant 0 : i32
    %c0_i32_1 = arith.constant 0 : i32
    return %c0_i32, %c0_i32_0 : i32, i32
  }
  func.func @transform_13(%arg0: i32) -> (i32, i32) {
    %c0_i32 = arith.constant 0 : i32
    %c0_i32_0 = arith.constant 0 : i32
    return %arg0, %c0_i32 : i32, i32
  }
}

</mosaic_0001>

<llo_original>
// kernel: tpu_custom_call.1
$region0: #{tpu_custom_call.1}
  #allocation0 [shape = 'u32[]', space=smem, size = 0x4, offset = 0x4, fixed_abs, tag = 'smem constant byte address 0x4 - core index']
  #allocation1 [shape = 'u32[144,128]{1,0:T(1,128)}', space=vmem, size = 0x12000, scoped, tag = 'internal scratch']
  #allocation2 [shape = 'f32[1,1]{1,0:T(1,128)S(1)}', space=vmem, size = 0x200, scoped, tag = 'scoped memory for tpu_custom_call.1']
  %s0 = inlined_call_operand.vmem [shape: f32[2,32], index: 0, kind: input, shape index: {}]
  %s1 = inlined_call_operand.hbm [shape: f32[16,16], index: 1, kind: input, shape index: {}]
  %s2 = inlined_call_operand.hbm [shape: f32[32,32], index: 2, kind: input, shape index: {}]
  %s3 = inlined_call_operand.hbm [shape: f32[16,32], index: 3, kind: input, shape index: {}]
  %s4 = inlined_call_operand.vmem [shape: f32[1,32], index: 4, kind: input, shape index: {}]
  %s5 = inlined_call_operand.vmem [shape: f32[1,32], index: 5, kind: input, shape index: {}]
  %s6 = inlined_call_operand.vmem [shape: f32[1,32], index: 6, kind: input, shape index: {}]
  %s7 = inlined_call_operand.hbm [shape: f32[32,32], index: 7, kind: input, shape index: {}]
  %s8 = inlined_call_operand.vmem [shape: f32[1,32], index: 8, kind: input, shape index: {}]
  %s9 = inlined_call_operand.vmem [shape: f32[1,32], index: 9, kind: input, shape index: {}]
  %s10 = inlined_call_operand.vmem [shape: f32[1,32], index: 10, kind: input, shape index: {}]
  %s11 = inlined_call_operand.vmem [shape: f32[1,32], index: 11, kind: input, shape index: {}]
  %s12 = inlined_call_operand.<no memory space> [shape: f32[1,1], index: 12, kind: input, shape index: {}]
  %s13 = inlined_call_operand.hbm [shape: f32[2,8], index: 13, kind: output, shape index: {}]
  %s14 = sld [smem:[#allocation0]]
  $region78: #{tpu_custom_call.1} parent=0
    _
  %s16 = ssub.s32 1, %s14
  %s17 = scalar_select 0, %s16, %s14
  %v18 = vstv %s12
  %19 = vst [vmem:[#allocation2] sm:$0x1] %v18
  $region1: #{tpu_custom_call.1} parent=0
    #allocation3 [shape = 'u8[8192]{0}', space=vmem, size = 0x2000, scoped, tag = 'input window, operand 1, single buffered']
    #allocation4 [shape = 's32[1]{0}', space=sflag, size = 0x4, scoped, tag = 'scoped memory for tpu_custom_call.1']
    #allocation5 [shape = 's32[1]{0}', space=sflag, size = 0x4, scoped, tag = 'scoped memory for tpu_custom_call.1']
    #allocation6 [shape = 'u8[16384]{0}', space=vmem, size = 0x4000, scoped, tag = 'input window, operand 2, single buffered']
    #allocation7 [shape = 's32[1]{0}', space=sflag, size = 0x4, scoped, tag = 'scoped memory for tpu_custom_call.1']
    #allocation8 [shape = 'u8[8192]{0}', space=vmem, size = 0x2000, scoped, tag = 'input window, operand 3, single buffered']
    #allocation9 [shape = 'u8[16384]{0}', space=vmem, size = 0x4000, scoped, tag = 'input window, operand 7, single buffered']
    #allocation10 [shape = 's32[1]{0}', space=sflag, size = 0x4, scoped, tag = 'scoped memory for tpu_custom_call.1']
    #allocation11 [shape = 'u8[1024]{0}', space=vmem, size = 0x400, scoped, tag = 'output window, operand 0, single buffered']
    %20 = vsyncpa [#allocation4], 0
    %21 = vsyncpa [#allocation7], 0
    %22 = vsyncpa [#allocation10], 0
    %23 = vsyncpa [#allocation5], 0
    // Predicated region
    $region2: #{tpu_custom_call.1} parent=1 // pred_check
      _
    $region3: #{tpu_custom_call.1} parent=1 // pred_check_branch
      %25 = sbr.rel (0) target = $region5
    $region4: #{tpu_custom_call.1} parent=1 // pred_region
      _
    $region5: #{tpu_custom_call.1} parent=1 // pred_fallthru
      _
    // Predicated region
    $region6: #{tpu_custom_call.1} parent=1 // pred_check
      _
    $region7: #{tpu_custom_call.1} parent=1 // pred_check_branch
      %27 = sbr.rel (0) target = $region9
    $region8: #{tpu_custom_call.1} parent=1 // pred_region
      %s29 = ssub.s32 256, 256
      %30 = vsyncadd [#allocation4], %s29
      %s31 = sshll.u32 [#allocation3], 4
      %s32 = int_to_ptr.vmem [resolvable:$true] %s31
      %37 = dma.hbm_to_vmem [thread:$0]  %s1, 256, %s32, [#allocation4], 128, 128, 8
    $region9: #{tpu_custom_call.1} parent=1 // pred_fallthru
      _
    // Predicated region
    $region10: #{tpu_custom_call.1} parent=1 // pred_check
      _
    $region11: #{tpu_custom_call.1} parent=1 // pred_check_branch
      %39 = sbr.rel (0) target = $region13
    $region12: #{tpu_custom_call.1} parent=1 // pred_region
      %s41 = ssub.s32 512, 512
      %42 = vsyncadd [#allocation7], %s41
      %s43 = sshll.u32 [#allocation6], 4
      %s44 = int_to_ptr.vmem [resolvable:$true] %s43
      %49 = dma.hbm_to_vmem [thread:$0]  %s2, 512, %s44, [#allocation7], 128, 128, 8
    $region13: #{tpu_custom_call.1} parent=1 // pred_fallthru
      _
    // Predicated region
    $region14: #{tpu_custom_call.1} parent=1 // pred_check
      _
    $region15: #{tpu_custom_call.1} parent=1 // pred_check_branch
      %51 = sbr.rel (0) target = $region17
    $region16: #{tpu_custom_call.1} parent=1 // pred_region
      %s53 = ssub.s32 256, 256
      %54 = vsyncadd [#allocation7], %s53
      %s55 = sshll.u32 [#allocation8], 4
      %s56 = int_to_ptr.vmem [resolvable:$true] %s55
      %61 = dma.hbm_to_vmem [thread:$0]  %s3, 256, %s56, [#allocation7], 128, 128, 8
    $region17: #{tpu_custom_call.1} parent=1 // pred_fallthru
      _
    // Predicated region
    $region18: #{tpu_custom_call.1} parent=1 // pred_check
      _
    $region19: #{tpu_custom_call.1} parent=1 // pred_check_branch
      %63 = sbr.rel (0) target = $region21
    $region20: #{tpu_custom_call.1} parent=1 // pred_region
      _
    $region21: #{tpu_custom_call.1} parent=1 // pred_fallthru
      _
    // Predicated region
    $region22: #{tpu_custom_call.1} parent=1 // pred_check
      _
    $region23: #{tpu_custom_call.1} parent=1 // pred_check_branch
      %65 = sbr.rel (0) target = $region25
    $region24: #{tpu_custom_call.1} parent=1 // pred_region
      _
    $region25: #{tpu_custom_call.1} parent=1 // pred_fallthru
      _
    // Predicated region
    $region26: #{tpu_custom_call.1} parent=1 // pred_check
      _
    $region27: #{tpu_custom_call.1} parent=1 // pred_check_branch
      %67 = sbr.rel (0) target = $region29
    $region28: #{tpu_custom_call.1} parent=1 // pred_region
      _
    $region29: #{tpu_custom_call.1} parent=1 // pred_fallthru
      _
    // Predicated region
    $region30: #{tpu_custom_call.1} parent=1 // pred_check
      _
    $region31: #{tpu_custom_call.1} parent=1 // pred_check_branch
      %69 = sbr.rel (0) target = $region33
    $region32: #{tpu_custom_call.1} parent=1 // pred_region
      %s71 = ssub.s32 512, 512
      %72 = vsyncadd [#allocation10], %s71
      %s73 = sshll.u32 [#allocation9], 4
      %s74 = int_to_ptr.vmem [resolvable:$true] %s73
      %79 = dma.hbm_to_vmem [thread:$0]  %s7, 512, %s74, [#allocation10], 128, 128, 8
    $region33: #{tpu_custom_call.1} parent=1 // pred_fallthru
      _
    // Predicated region
    $region34: #{tpu_custom_call.1} parent=1 // pred_check
      _
    $region35: #{tpu_custom_call.1} parent=1 // pred_check_branch
      %81 = sbr.rel (0) target = $region37
    $region36: #{tpu_custom_call.1} parent=1 // pred_region
      _
    $region37: #{tpu_custom_call.1} parent=1 // pred_fallthru
      _
    // Predicated region
    $region38: #{tpu_custom_call.1} parent=1 // pred_check
      _
    $region39: #{tpu_custom_call.1} parent=1 // pred_check_branch
      %83 = sbr.rel (0) target = $region41
    $region40: #{tpu_custom_call.1} parent=1 // pred_region
      _
    $region41: #{tpu_custom_call.1} parent=1 // pred_fallthru
      _
    // Predicated region
    $region42: #{tpu_custom_call.1} parent=1 // pred_check
      _
    $region43: #{tpu_custom_call.1} parent=1 // pred_check_branch
      %85 = sbr.rel (0) target = $region45
    $region44: #{tpu_custom_call.1} parent=1 // pred_region
      _
    $region45: #{tpu_custom_call.1} parent=1 // pred_fallthru
      _
    // Predicated region
    $region46: #{tpu_custom_call.1} parent=1 // pred_check
      _
    $region47: #{tpu_custom_call.1} parent=1 // pred_check_branch
      %87 = sbr.rel (0) target = $region49
    $region48: #{tpu_custom_call.1} parent=1 // pred_region
      _
    $region49: #{tpu_custom_call.1} parent=1 // pred_fallthru
      _
    // Predicated region
    $region50: #{tpu_custom_call.1} parent=1 // pred_check
      _
    $region51: #{tpu_custom_call.1} parent=1 // pred_check_branch
      %89 = sbr.rel (0) target = $region53
    $region52: #{tpu_custom_call.1} parent=1 // pred_region
      _
    $region53: #{tpu_custom_call.1} parent=1 // pred_fallthru
      _
    // Predicated region
    $region54: #{tpu_custom_call.1} parent=1 // pred_check
      _
    $region55: #{tpu_custom_call.1} parent=1 // pred_check_branch
      %91 = sbr.rel (0) target = $region57
    $region56: #{tpu_custom_call.1} parent=1 // pred_region
      %92 = dma.done [#allocation4], 256
    $region57: #{tpu_custom_call.1} parent=1 // pred_fallthru
      _
    // Predicated region
    $region58: #{tpu_custom_call.1} parent=1 // pred_check
      _
    $region59: #{tpu_custom_call.1} parent=1 // pred_check_branch
      %94 = sbr.rel (0) target = $region61
    $region60: #{tpu_custom_call.1} parent=1 // pred_region
      %95 = dma.done [#allocation7], 512
    $region61: #{tpu_custom_call.1} parent=1 // pred_fallthru
      _
    // Predicated region
    $region62: #{tpu_custom_call.1} parent=1 // pred_check
      _
    $region63: #{tpu_custom_call.1} parent=1 // pred_check_branch
      %97 = sbr.rel (0) target = $region65
    $region64: #{tpu_custom_call.1} parent=1 // pred_region
      %98 = dma.done [#allocation7], 256
    $region65: #{tpu_custom_call.1} parent=1 // pred_fallthru
      _
    // Predicated region
    $region66: #{tpu_custom_call.1} parent=1 // pred_check
      _
    $region67: #{tpu_custom_call.1} parent=1 // pred_check_branch
      %100 = sbr.rel (0) target = $region69
    $region68: #{tpu_custom_call.1} parent=1 // pred_region
      %101 = dma.done [#allocation10], 512
    $region69: #{tpu_custom_call.1} parent=1 // pred_fallthru
      _
    %v102 = vld [vmem:[%s0] sm:$0x3]
    %v103 = vld [vmem:[#allocation3] sm:$0xff]
    %v104 = vld [vmem:[#allocation3 + $0x8] sm:$0xff]
    %v105 = vld [vmem:[#allocation6] sm:$0xff]
    %v106 = vld [vmem:[#allocation6 + $0x8] sm:$0xff]
    %v107 = vld [vmem:[#allocation6 + $0x10] sm:$0xff]
    %v108 = vld [vmem:[#allocation6 + $0x18] sm:$0xff]
    %v109 = vld [vmem:[%s4] sm:$0x1]
    %v111 = vlaneseq
    %v112 = vshrl.u32 %v111, 7
    %v113 = vsub.s32 0, %v112
    %v114 = vrot.slane %v109, %v113
    %vm116 = vcmask 261120
    %v118 = vsel %vm116, %v102, 0
    %120 = vmatprep.subr.mxu0 0.0
    %121 = vmatpush1.msra.mxu0 0.0
    %122 = vmatprep.subr.mxu0 0.0
    %123 = vmatpush1.msra.mxu0 0.0
    %124 = vmatprep.subr.mxu0 0.0
    %125 = vmatpush1.msra.mxu0 0.0
    %126 = vmatprep.subr.mxu0 0.0
    %127 = vmatpush1.msra.mxu0 0.0
    %128 = vmatprep.subr.mxu0 0.0
    %129 = vmatpush1.msra.mxu0 0.0
    %130 = vmatprep.subr.mxu0 0.0
    %131 = vmatpush1.msra.mxu0 0.0
    %132 = vmatprep.subr.mxu0 0.0
    %133 = vmatpush1.msra.mxu0 0.0
    %134 = vmatprep.subr.mxu0 0.0
    %135 = vmatpush1.msra.mxu0 0.0
    %136 = vmatprep.subr.mxu0 0.0
    %137 = vmatpush1.msra.mxu0 0.0
    %138 = vmatprep.subr.mxu0 0.0
    %139 = vmatpush1.msra.mxu0 0.0
    %140 = vmatprep.subr.mxu0 0.0
    %141 = vmatpush1.msra.mxu0 0.0
    %142 = vmatprep.subr.mxu0 0.0
    %143 = vmatpush1.msra.mxu0 0.0
    %144 = vmatprep.subr.mxu0 0.0
    %145 = vmatpush1.msra.mxu0 %v108
    %146 = vmatprep.subr.mxu0 0.0
    %147 = vmatpush1.msra.mxu0 %v107
    %148 = vmatprep.subr.mxu0 0.0
    %149 = vmatpush1.msra.mxu0 %v106
    %150 = vmatprep.subr.mxu0 0.0
    %151 = vmatpush1.msra.mxu0 %v105
    %152 = vmatprep.subr.mxu0 0.0
    %153 = vmatpush2.msra.mxu0 0.0
    %154 = vmatprep.subr.mxu0 0.0
    %155 = vmatpush2.msra.mxu0 0.0
    %156 = vmatprep.subr.mxu0 0.0
    %157 = vmatpush2.msra.mxu0 0.0
    %158 = vmatprep.subr.mxu0 0.0
    %159 = vmatpush2.msra.mxu0 0.0
    %160 = vmatprep.subr.mxu0 0.0
    %161 = vmatpush2.msra.mxu0 0.0
    %162 = vmatprep.subr.mxu0 0.0
    %163 = vmatpush2.msra.mxu0 0.0
    %164 = vmatprep.subr.mxu0 0.0
    %165 = vmatpush2.msra.mxu0 0.0
    %166 = vmatprep.subr.mxu0 0.0
    %167 = vmatpush2.msra.mxu0 0.0
    %168 = vmatprep.subr.mxu0 0.0
    %169 = vmatpush2.msra.mxu0 0.0
    %170 = vmatprep.subr.mxu0 0.0
    %171 = vmatpush2.msra.mxu0 0.0
    %172 = vmatprep.subr.mxu0 0.0
    %173 = vmatpush2.msra.mxu0 0.0
    %174 = vmatprep.subr.mxu0 0.0
    %175 = vmatpush2.msra.mxu0 0.0
    %176 = vmatprep.subr.mxu0 0.0
    %177 = vmatpush2.msra.mxu0 0.0
    %178 = vmatprep.subr.mxu0 0.0
    %179 = vmatpush2.msra.mxu0 0.0
    %180 = vmatprep.subr.mxu0 0.0
    %181 = vmatpush2.msra.mxu0 0.0
    %182 = vmatprep.subr.mxu0 0.0
    %183 = vmatpush2.msra.mxu0 0.0
    %184 = vmatprep.mubr.f32.mxu0 0.0
    %185 = vmatmul.mubr.f32.gmra.mxu0 %v118
    %v186 = vpop.f32.mrf.mxu0
    %v187 = vadd.f32 %v114, %v186
    %v188 = vpop.f32.mrf.mxu0
    %189 = vdwg.mxu0
    %v190 = vld [vmem:[#allocation8] sm:$0xff]
    %v191 = vld [vmem:[#allocation8 + $0x8] sm:$0xff]
    %vm192 = vcmask 130048
    %v194 = vsel %vm192, %v103, 0
    %v197 = vsel %vm192, %v104, 0
    %199 = vmatprep.subr.mxu0 0.0
    %200 = vmatpush1.msra.mxu0 0.0
    %201 = vmatprep.subr.mxu0 0.0
    %202 = vmatpush1.msra.mxu0 0.0
    %203 = vmatprep.subr.mxu0 0.0
    %204 = vmatpush1.msra.mxu0 0.0
    %205 = vmatprep.subr.mxu0 0.0
    %206 = vmatpush1.msra.mxu0 0.0
    %207 = vmatprep.subr.mxu0 0.0
    %208 = vmatpush1.msra.mxu0 0.0
    %209 = vmatprep.subr.mxu0 0.0
    %210 = vmatpush1.msra.mxu0 0.0
    %211 = vmatprep.subr.mxu0 0.0
    %212 = vmatpush1.msra.mxu0 0.0
    %213 = vmatprep.subr.mxu0 0.0
    %214 = vmatpush1.msra.mxu0 0.0
    %215 = vmatprep.subr.mxu0 0.0
    %216 = vmatpush1.msra.mxu0 0.0
    %217 = vmatprep.subr.mxu0 0.0
    %218 = vmatpush1.msra.mxu0 0.0
    %219 = vmatprep.subr.mxu0 0.0
    %220 = vmatpush1.msra.mxu0 0.0
    %221 = vmatprep.subr.mxu0 0.0
    %222 = vmatpush1.msra.mxu0 0.0
    %223 = vmatprep.subr.mxu0 0.0
    %224 = vmatpush1.msra.mxu0 0.0
    %225 = vmatprep.subr.mxu0 0.0
    %226 = vmatpush1.msra.mxu0 0.0
    %227 = vmatprep.subr.mxu0 0.0
    %228 = vmatpush1.msra.mxu0 %v191
    %229 = vmatprep.subr.mxu0 0.0
    %230 = vmatpush1.msra.mxu0 %v190
    %231 = vmatprep.subr.mxu0 0.0
    %232 = vmatpush2.msra.mxu0 0.0
    %233 = vmatprep.subr.mxu0 0.0
    %234 = vmatpush2.msra.mxu0 0.0
    %235 = vmatprep.subr.mxu0 0.0
    %236 = vmatpush2.msra.mxu0 0.0
    %237 = vmatprep.subr.mxu0 0.0
    %238 = vmatpush2.msra.mxu0 0.0
    %239 = vmatprep.subr.mxu0 0.0
    %240 = vmatpush2.msra.mxu0 0.0
    %241 = vmatprep.subr.mxu0 0.0
    %242 = vmatpush2.msra.mxu0 0.0
    %243 = vmatprep.subr.mxu0 0.0
    %244 = vmatpush2.msra.mxu0 0.0
    %245 = vmatprep.subr.mxu0 0.0
    %246 = vmatpush2.msra.mxu0 0.0
    %247 = vmatprep.subr.mxu0 0.0
    %248 = vmatpush2.msra.mxu0 0.0
    %249 = vmatprep.subr.mxu0 0.0
    %250 = vmatpush2.msra.mxu0 0.0
    %251 = vmatprep.subr.mxu0 0.0
    %252 = vmatpush2.msra.mxu0 0.0
    %253 = vmatprep.subr.mxu0 0.0
    %254 = vmatpush2.msra.mxu0 0.0
    %255 = vmatprep.subr.mxu0 0.0
    %256 = vmatpush2.msra.mxu0 0.0
    %257 = vmatprep.subr.mxu0 0.0
    %258 = vmatpush2.msra.mxu0 0.0
    %259 = vmatprep.subr.mxu0 0.0
    %260 = vmatpush2.msra.mxu0 0.0
    %261 = vmatprep.subr.mxu0 0.0
    %262 = vmatpush2.msra.mxu0 0.0
    %263 = vmatprep.mubr.f32.mxu0 0.0
    %264 = vmatmul.mubr.f32.gmra.mxu0 %v194
    %v265 = vpop.f32.mrf.mxu0
    %v266 = vadd.f32 0.0, %v265
    %v267 = vpop.f32.mrf.mxu0
    %268 = vmatprep.mubr.f32.mxu0 0.0
    %269 = vmatmul.mubr.f32.gmra.mxu0 %v197
    %v270 = vpop.f32.mrf.mxu0
    %v271 = vadd.f32 0.0, %v270
    %v272 = vpop.f32.mrf.mxu0
    %273 = vdwg.mxu0
    %v276 = vunpack.c.l.s4 1966171168
    %v277 = vunpack.c.0.s8 %v276
    %v278 = vlaneseq
    %v279 = vshrl.u32 %v278, 7
    %v280 = vsub.s32 %v277, %v279
    %v281 = vrot.slane %v187, %v280
    %v282 = vcombine.high %v281, %v281
    %v284 = vunpack.c.l.s4 1966171168
    %v285 = vunpack.c.0.s8 %v284
    %v286 = vlaneseq
    %v287 = vshrl.u32 %v286, 7
    %v288 = vsub.s32 %v285, %v287
    %v289 = vrot.slane %v281, %v288
    %v291 = vunpack.c.l.s4 1966171168
    %v292 = vunpack.c.0.s8 %v291
    %v293 = vlaneseq
    %v294 = vshrl.u32 %v293, 7
    %v295 = vsub.s32 %v292, %v294
    %v296 = vrot.slane %v282, %v295
    %v297 = vlaneseq
    %v298 = vshrl.u32 %v297, 7
    %v299 = vsub.s32 0, %v298
    %v300 = vrot.slane %v289, %v299
    %v301 = vlaneseq
    %v302 = vshrl.u32 %v301, 7
    %v303 = vsub.s32 0, %v302
    %v304 = vrot.slane %v296, %v303
    %v307 = vadd.f32 %v266, %v300
    %v308 = vadd.f32 %v271, %v304
    %v309 = vld [vmem:[%s5] sm:$0x1]
    %v310 = vld [vmem:[%s6] sm:$0x1]
    %v311 = vsel %vm116, %v307, 0.0
    %312 = vadd.xlane.f32.xlu0 %v311
    %v313 = vpop.xlane.xlu0 %312
    %v314 = vsel %vm116, %v308, 0.0
    %315 = vadd.xlane.f32.xlu0 %v314
    %v316 = vpop.xlane.xlu0 %315
    %v317 = vrcp.pop 32.0
    %v318 = vmul.f32 %v313, %v317
    %v319 = vmul.f32 %v316, %v317
    %v320 = vsub.f32 %v307, %v318
    %v321 = vsub.f32 %v308, %v319
    %v322 = vmul.f32 %v320, %v320
    %v323 = vmul.f32 %v321, %v321
    %v324 = vsel %vm116, %v322, 0.0
    %325 = vadd.xlane.f32.xlu0 %v324
    %v326 = vpop.xlane.xlu0 %325
    %v327 = vsel %vm116, %v323, 0.0
    %328 = vadd.xlane.f32.xlu0 %v327
    %v329 = vpop.xlane.xlu0 %328
    %v330 = vmul.f32 %v326, %v317
    %v331 = vmul.f32 %v329, %v317
    %v332 = vadd.f32 %v330, 1e-05
    %v333 = vadd.f32 %v331, 1e-05
    %v334 = vrsqrt.pop %v332
    %v335 = vrsqrt.pop %v333
    %v336 = vmul.f32 %v320, %v334
    %v337 = vmul.f32 %v321, %v335
    %v339 = vlaneseq
    %v340 = vshrl.u32 %v339, 7
    %v341 = vsub.s32 0, %v340
    %v342 = vrot.slane %v309, %v341
    %v344 = vmul.f32 %v336, %v342
    %v345 = vmul.f32 %v337, %v342
    %v347 = vlaneseq
    %v348 = vshrl.u32 %v347, 7
    %v349 = vsub.s32 0, %v348
    %v350 = vrot.slane %v310, %v349
    %v352 = vadd.f32 %v344, %v350
    %v353 = vadd.f32 %v345, %v350
    %v354 = vmax.f32 %v352, 0.0
    %v355 = vmax.f32 %v353, 0.0
    %v356 = vld [vmem:[#allocation9] sm:$0xff]
    %v357 = vld [vmem:[#allocation9 + $0x8] sm:$0xff]
    %v358 = vld [vmem:[#allocation9 + $0x10] sm:$0xff]
    %v359 = vld [vmem:[#allocation9 + $0x18] sm:$0xff]
    %v360 = vld [vmem:[%s8] sm:$0x1]
    %v362 = vlaneseq
    %v363 = vshrl.u32 %v362, 7
    %v364 = vsub.s32 0, %v363
    %v365 = vrot.slane %v360, %v364
    %v368 = vsel %vm116, %v354, 0
    %v371 = vsel %vm116, %v355, 0
    %373 = vmatprep.subr.mxu0 0.0
    %374 = vmatpush1.msra.mxu0 0.0
    %375 = vmatprep.subr.mxu0 0.0
    %376 = vmatpush1.msra.mxu0 0.0
    %377 = vmatprep.subr.mxu0 0.0
    %378 = vmatpush1.msra.mxu0 0.0
    %379 = vmatprep.subr.mxu0 0.0
    %380 = vmatpush1.msra.mxu0 0.0
    %381 = vmatprep.subr.mxu0 0.0
    %382 = vmatpush1.msra.mxu0 0.0
    %383 = vmatprep.subr.mxu0 0.0
    %384 = vmatpush1.msra.mxu0 0.0
    %385 = vmatprep.subr.mxu0 0.0
    %386 = vmatpush1.msra.mxu0 0.0
    %387 = vmatprep.subr.mxu0 0.0
    %388 = vmatpush1.msra.mxu0 0.0
    %389 = vmatprep.subr.mxu0 0.0
    %390 = vmatpush1.msra.mxu0 0.0
    %391 = vmatprep.subr.mxu0 0.0
    %392 = vmatpush1.msra.mxu0 0.0
    %393 = vmatprep.subr.mxu0 0.0
    %394 = vmatpush1.msra.mxu0 0.0
    %395 = vmatprep.subr.mxu0 0.0
    %396 = vmatpush1.msra.mxu0 0.0
    %397 = vmatprep.subr.mxu0 0.0
    %398 = vmatpush1.msra.mxu0 %v359
    %399 = vmatprep.subr.mxu0 0.0
    %400 = vmatpush1.msra.mxu0 %v358
    %401 = vmatprep.subr.mxu0 0.0
    %402 = vmatpush1.msra.mxu0 %v357
    %403 = vmatprep.subr.mxu0 0.0
    %404 = vmatpush1.msra.mxu0 %v356
    %405 = vmatprep.subr.mxu0 0.0
    %406 = vmatpush2.msra.mxu0 0.0
    %407 = vmatprep.subr.mxu0 0.0
    %408 = vmatpush2.msra.mxu0 0.0
    %409 = vmatprep.subr.mxu0 0.0
    %410 = vmatpush2.msra.mxu0 0.0
    %411 = vmatprep.subr.mxu0 0.0
    %412 = vmatpush2.msra.mxu0 0.0
    %413 = vmatprep.subr.mxu0 0.0
    %414 = vmatpush2.msra.mxu0 0.0
    %415 = vmatprep.subr.mxu0 0.0
    %416 = vmatpush2.msra.mxu0 0.0
    %417 = vmatprep.subr.mxu0 0.0
    %418 = vmatpush2.msra.mxu0 0.0
    %419 = vmatprep.subr.mxu0 0.0
    %420 = vmatpush2.msra.mxu0 0.0
    %421 = vmatprep.subr.mxu0 0.0
    %422 = vmatpush2.msra.mxu0 0.0
    %423 = vmatprep.subr.mxu0 0.0
    %424 = vmatpush2.msra.mxu0 0.0
    %425 = vmatprep.subr.mxu0 0.0
    %426 = vmatpush2.msra.mxu0 0.0
    %427 = vmatprep.subr.mxu0 0.0
    %428 = vmatpush2.msra.mxu0 0.0
    %429 = vmatprep.subr.mxu0 0.0
    %430 = vmatpush2.msra.mxu0 0.0
    %431 = vmatprep.subr.mxu0 0.0
    %432 = vmatpush2.msra.mxu0 0.0
    %433 = vmatprep.subr.mxu0 0.0
    %434 = vmatpush2.msra.mxu0 0.0
    %435 = vmatprep.subr.mxu0 0.0
    %436 = vmatpush2.msra.mxu0 0.0
    %437 = vmatprep.mubr.f32.mxu0 0.0
    %438 = vmatmul.mubr.f32.gmra.mxu0 %v368
    %v439 = vpop.f32.mrf.mxu0
    %v440 = vadd.f32 %v365, %v439
    %v441 = vpop.f32.mrf.mxu0
    %442 = vmatprep.mubr.f32.mxu0 0.0
    %443 = vmatmul.mubr.f32.gmra.mxu0 %v371
    %v444 = vpop.f32.mrf.mxu0
    %v445 = vadd.f32 %v365, %v444
    %v446 = vpop.f32.mrf.mxu0
    %447 = vdwg.mxu0
    %v448 = vld [vmem:[%s9] sm:$0x1]
    %v449 = vld [vmem:[%s10] sm:$0x1]
    %v450 = vsel %vm116, %v440, 0.0
    %451 = vadd.xlane.f32.xlu0 %v450
    %v452 = vpop.xlane.xlu0 %451
    %v453 = vsel %vm116, %v445, 0.0
    %454 = vadd.xlane.f32.xlu0 %v453
    %v455 = vpop.xlane.xlu0 %454
    %v456 = vmul.f32 %v452, %v317
    %v457 = vmul.f32 %v455, %v317
    %v458 = vsub.f32 %v440, %v456
    %v459 = vsub.f32 %v445, %v457
    %v460 = vmul.f32 %v458, %v458
    %v461 = vmul.f32 %v459, %v459
    %v462 = vsel %vm116, %v460, 0.0
    %463 = vadd.xlane.f32.xlu0 %v462
    %v464 = vpop.xlane.xlu0 %463
    %v465 = vsel %vm116, %v461, 0.0
    %466 = vadd.xlane.f32.xlu0 %v465
    %v467 = vpop.xlane.xlu0 %466
    %v468 = vmul.f32 %v464, %v317
    %v469 = vmul.f32 %v467, %v317
    %v470 = vadd.f32 %v468, 1e-05
    %v471 = vadd.f32 %v469, 1e-05
    %v472 = vrsqrt.pop %v470
    %v473 = vrsqrt.pop %v471
    %v474 = vmul.f32 %v458, %v472
    %v475 = vmul.f32 %v459, %v473
    %v477 = vlaneseq
    %v478 = vshrl.u32 %v477, 7
    %v479 = vsub.s32 0, %v478
    %v480 = vrot.slane %v448, %v479
    %v482 = vmul.f32 %v474, %v480
    %v483 = vmul.f32 %v475, %v480
    %v485 = vlaneseq
    %v486 = vshrl.u32 %v485, 7
    %v487 = vsub.s32 0, %v486
    %v488 = vrot.slane %v449, %v487
    %v490 = vadd.f32 %v482, %v488
    %v491 = vadd.f32 %v483, %v488
    %v492 = vmax.f32 %v490, 0.0
    %v493 = vmax.f32 %v491, 0.0
    %v494 = vld [vmem:[%s11] sm:$0x1]
    %v496 = vlaneseq
    %v497 = vshrl.u32 %v496, 7
    %v498 = vsub.s32 0, %v497
    %v499 = vrot.slane %v494, %v498
    %v501 = vmul.f32 %v492, %v499
    %v502 = vmul.f32 %v493, %v499
    %v503 = vsel %vm116, %v501, 0.0
    %504 = vadd.xlane.f32.xlu0 %v503
    %v505 = vpop.xlane.xlu0 %504
    %v506 = vsel %vm116, %v502, 0.0
    %507 = vadd.xlane.f32.xlu0 %v506
    %v508 = vpop.xlane.xlu0 %507
    %v509 = vld [vmem:[#allocation2] sm:$0x1]
    %v511 = vlaneseq
    %v512 = vshrl.u32 %v511, 7
    %v513 = vsub.s32 0, %v512
    %v514 = vrot.slane %v509, %v513
    %515 = vset.pattern.permute.xlu0 0
    %516 = vperm.xlu0 %515, %v514
    %v517 = vpop.permute.xlu0 %516
    %v519 = vadd.f32 %v505, %v517
    %v520 = vadd.f32 %v508, %v517
    %v523 = vlaneseq
    %v524 = vand.u32 %v523, 127
    %v525 = vlaneseq
    %v526 = vshrl.u32 %v525, 7
    %v527 = vsub.s32 %v524, %v526
    %v528 = vrot.slane %v519, %v527
    %v529 = vlaneseq
    %v530 = vshrl.u32 %v529, 7
    %v531 = vsub.s32 %v524, %v530
    %v532 = vrot.slane %v520, %v531
    %vm533 = vcmask 1041409
    %v534 = vsel %vm533, %v532, %v528
    %vm536 = vcmask 58368
    %v537 = vsel %vm536, %v534, -inf
    %538 = vmax.xlane.f32.xlu0 %v537
    %v539 = vpop.xlane.xlu0 %538
    %v541 = vlaneseq
    %v542 = vshrl.u32 %v541, 7
    %v543 = vsub.s32 0, %v542
    %v544 = vrot.slane %v539, %v543
    %v545 = vlaneseq
    %v546 = vshrl.u32 %v545, 7
    %v547 = vsub.s32 1, %v546
    %v548 = vrot.slane %v539, %v547
    %v551 = vsub.f32 %v519, %v544
    %v552 = vsub.f32 %v520, %v548
    %v553 = vmul.f32 %v551, 1.442695
    %v554 = vpow.pop %v553
    %v555 = vmul.f32 %v552, 1.442695
    %v556 = vpow.pop %v555
    %559 = vset.pattern.permute.xlu0 0
    %560 = vperm.xlu0 %559, %v554
    %v561 = vpop.permute.xlu0 %560
    %562 = vset.pattern.permute.xlu0 0
    %563 = vperm.xlu0 %562, %v556
    %v564 = vpop.permute.xlu0 %563
    %v565 = vlaneseq
    %v566 = vshrl.u32 %v565, 7
    %v567 = vsub.s32 %v524, %v566
    %v568 = vrot.slane %v561, %v567
    %v569 = vlaneseq
    %v570 = vshrl.u32 %v569, 7
    %v571 = vsub.s32 %v524, %v570
    %v572 = vrot.slane %v564, %v571
    %v573 = vsel %vm533, %v572, %v568
    %v575 = vsel %vm536, %v573, 0.0
    %576 = vadd.xlane.f32.xlu0 %v575
    %v577 = vpop.xlane.xlu0 %576
    %v578 = vrcp.pop %v577
    %v580 = vlaneseq
    %v581 = vshrl.u32 %v580, 7
    %v582 = vsub.s32 0, %v581
    %v583 = vrot.slane %v578, %v582
    %v584 = vlaneseq
    %v585 = vshrl.u32 %v584, 7
    %v586 = vsub.s32 1, %v585
    %v587 = vrot.slane %v578, %v586
    %v590 = vmul.f32 %v554, %v583
    %v591 = vmul.f32 %v556, %v587
    %594 = vset.pattern.permute.xlu0 0
    %595 = vperm.xlu0 %594, %v590
    %v596 = vpop.permute.xlu0 %595
    %597 = vset.pattern.permute.xlu0 0
    %598 = vperm.xlu0 %597, %v591
    %v599 = vpop.permute.xlu0 %598
    %v600 = vlaneseq
    %v601 = vshrl.u32 %v600, 7
    %v602 = vsub.s32 %v524, %v601
    %v603 = vrot.slane %v596, %v602
    %v604 = vlaneseq
    %v605 = vshrl.u32 %v604, 7
    %v606 = vsub.s32 %v524, %v605
    %v607 = vrot.slane %v599, %v606
    %v608 = vsel %vm533, %v607, %v603
    %610 = vst.msk [vmem:[#allocation11] sm:$0x3] %vm536, %v608
    // Predicated region
    $region70: #{tpu_custom_call.1} parent=1 // pred_check
      _
    $region71: #{tpu_custom_call.1} parent=1 // pred_check_branch
      %612 = sbr.rel (0) target = $region73
    $region72: #{tpu_custom_call.1} parent=1 // pred_region
      %s614 = ssub.s32 32, 32
      %615 = vsyncadd [#allocation5], %s614
      %s617 = sshll.u32 [#allocation11], 4
      %s618 = int_to_ptr.vmem [resolvable:$true] %s617
      %620 = dma.vmem_to_hbm [thread:$0]  %s618, 32, %s13, [#allocation5]
    $region73: #{tpu_custom_call.1} parent=1 // pred_fallthru
      _
    // Predicated region
    $region74: #{tpu_custom_call.1} parent=1 // pred_check
      _
    $region75: #{tpu_custom_call.1} parent=1 // pred_check_branch
      %622 = sbr.rel (0) target = $region77
    $region76: #{tpu_custom_call.1} parent=1 // pred_region
      %623 = dma.done [#allocation5], 32
    $region77: #{tpu_custom_call.1} parent=1 // pred_fallthru
      _
    %624 = vsyncpa [#allocation4], 1
    %625 = vsyncpa [#allocation7], 1
    %626 = vsyncpa [#allocation10], 1
    %627 = vsyncpa [#allocation5], 1

</llo_original>
